<compile_context>
chip_gen: v5e
topology: v5e:2x2
jax: 0.10.0
libtpu: 0.0.40
codegen_flags: <defaults>
</compile_context>

<pallas_src>
import functools

import jax
import jax.numpy as jnp
import numpy as np
from jax.experimental import pallas as pl
from jax.experimental.pallas import tpu as pltpu


def _posenc_kernel(chan_ref, mode_ref, freq_ref, x_ref, o_ref, *,
                   mult_factor, D, without_self):
    """chan/mode/freq: (1, D*K) lane tables;  x: (TM, D);  o: (TM, D*K)."""
    x = x_ref[...]                     # (TM, D)
    chan = chan_ref[...]               # (1, DK) int32: source channel per lane
    mode = mode_ref[...]               # (1, DK) int32: 0=self, 1=sin, 2=cos
    freq = freq_ref[...]               # (1, DK) x.dtype: factor**i per lane
    tm = x.shape[0]
    dk = o_ref.shape[-1]

    # Replicate each input channel across its K output lanes (lane broadcast +
    # per-lane select against the constant channel table).
    x_sel = jnp.broadcast_to(x[:, D - 1:D], (tm, dk))
    for d in range(D - 2, -1, -1):
        x_sel = jnp.where(chan == d,
                          jnp.broadcast_to(x[:, d:d + 1], (tm, dk)),
                          x_sel)

    # Same multiplication order as the reference: (factor**i * x) * mult_factor
    scaled = (freq * x_sel) * mult_factor
    s = jnp.sin(scaled)                # one batched EUP call each
    c = jnp.cos(scaled)
    out = jnp.where(mode == 1, s, c)
    if not without_self:
        out = jnp.where(mode == 0, x_sel, out)

    o_ref[...] = out.astype(o_ref.dtype)   # single wide store of the block


def pose_enc(x, L_embed, factor=2.0, mult_factor=1.0, without_self=False,
             *, tile_rows=4096):
    """Pallas implementation of PoseEnc.forward(x, L_embed, without_self)."""
    lead = x.shape[:-1]
    D = x.shape[-1]
    K = (0 if without_self else 1) + 2 * L_embed
    if K == 0:
        # L_embed == 0 and without_self -> empty feature dim
        return jnp.zeros(lead + (0,), x.dtype)

    N = int(np.prod(lead)) if lead else 1
    DK = D * K
    x2 = x.reshape(N, D)

    # Per-output-lane constant tables, shape (1, D*K).
    chan_np = np.zeros((1, DK), np.int32)
    mode_np = np.zeros((1, DK), np.int32)
    freq_np = np.ones((1, DK), np.float64)
    for d in range(D):
        for k in range(K):
            j = d * K + k
            chan_np[0, j] = d
            if (not without_self) and k == 0:
                mode_np[0, j] = 0          # identity lane
                freq_np[0, j] = 1.0
            else:
                kk = k - (0 if without_self else 1)
                i = kk // 2
                mode_np[0, j] = 1 if (kk % 2 == 0) else 2   # sin / cos
                freq_np[0, j] = factor ** i
    chan = jnp.asarray(chan_np)
    mode = jnp.asarray(mode_np)
    freq = jnp.asarray(freq_np, dtype=x.dtype)   # rounded like the reference

    # Row tile: large, multiple of the sublane granule for this dtype, never
    # (much) bigger than the array.  No input padding: pl.cdiv grid + Pallas
    # boundary-block masking handle the ragged tail.
    itemsize = jnp.dtype(x.dtype).itemsize
    sub = {4: 8, 2: 16, 1: 32}.get(itemsize, 8)
    tm = max(sub, (tile_rows // sub) * sub)
    n_ceil = ((N + sub - 1) // sub) * sub
    tm = min(tm, n_ceil)
    grid = (pl.cdiv(N, tm),)

    kernel = functools.partial(
        _posenc_kernel,
        mult_factor=mult_factor,
        D=D,
        without_self=without_self,
    )

    out = pl.pallas_call(
        kernel,
        out_shape=jax.ShapeDtypeStruct((N, DK), x.dtype),
        grid=grid,
        in_specs=[
            pl.BlockSpec((1, DK), lambda i: (0, 0)),    # chan table
            pl.BlockSpec((1, DK), lambda i: (0, 0)),    # mode table
            pl.BlockSpec((1, DK), lambda i: (0, 0)),    # freq table
            pl.BlockSpec((tm, D), lambda i: (i, 0)),    # x rows
        ],
        out_specs=pl.BlockSpec((tm, DK), lambda i: (i, 0)),
        compiler_params=pltpu.CompilerParams(
            dimension_semantics=("parallel",),
            vmem_limit_bytes=32 * 1024 * 1024,
        ),
    )(chan, mode, freq, x2)

    return out.reshape(*lead, DK)


def _posenc_ref(x, L_embed, factor=2.0, without_self=False, mult_factor=1.0):
    """Pure-JAX transcription of the PyTorch reference, for correctness check."""
    rets = [] if without_self else [x]
    for i in range(L_embed):
        rets.append(jnp.sin(factor ** i * x * mult_factor))
        rets.append(jnp.cos(factor ** i * x * mult_factor))
    stacked = jnp.stack(rets, axis=-1)
    return stacked.reshape(*x.shape[:-1], x.shape[-1] * len(rets))


if __name__ == "__main__":
    key = jax.random.PRNGKey(0)
    # Typical PoseEnc input: batch of 3-D points, (B, N_pts, 3)
    x = jax.random.normal(key, (2, 8, 3), dtype=jnp.float32)
    L_embed = 4
    factor = 2.0
    mult_factor = 1.0

    # with self
    y = pose_enc(x, L_embed, factor=factor, mult_factor=mult_factor,
                 without_self=False)
    y = jax.block_until_ready(y)
    y_ref = _posenc_ref(x, L_embed, factor=factor, without_self=False,
                        mult_factor=mult_factor)
    assert y.shape == (2, 8, 3 * (1 + 2 * L_embed)), y.shape
    np.testing.assert_allclose(np.asarray(y), np.asarray(y_ref),
                               rtol=1e-5, atol=1e-5)

    # without self
    y2 = pose_enc(x, L_embed, factor=factor, mult_factor=mult_factor,
                  without_self=True)
    y2 = jax.block_until_ready(y2)
    y2_ref = _posenc_ref(x, L_embed, factor=factor, without_self=True,
                         mult_factor=mult_factor)
    assert y2.shape == (2, 8, 3 * (2 * L_embed)), y2.shape
    np.testing.assert_allclose(np.asarray(y2), np.asarray(y2_ref),
                               rtol=1e-5, atol=1e-5)

    # multi-tile grid with a ragged (masked) boundary block
    key2 = jax.random.PRNGKey(1)
    x3 = jax.random.normal(key2, (3, 1357, 3), dtype=jnp.float32)
    y3 = pose_enc(x3, 3, factor=factor, mult_factor=0.5, without_self=False,
                  tile_rows=512)
    y3 = jax.block_until_ready(y3)
    y3_ref = _posenc_ref(x3, 3, factor=factor, without_self=False,
                         mult_factor=0.5)
    np.testing.assert_allclose(np.asarray(y3), np.asarray(y3_ref),
                               rtol=1e-5, atol=1e-5)

    print("KERNEL_OK")
</pallas_src>

<mosaic_0001>
module attributes {stable_mosaic.version = 11 : i64} {
  func.func @_posenc_kernel(%arg0: i32, %arg1: memref<1x27xi32, #tpu.memory_space<vmem>>, %arg2: memref<1x27xi32, #tpu.memory_space<vmem>>, %arg3: memref<1x27xf32, #tpu.memory_space<vmem>>, %arg4: memref<16x3xf32, #tpu.memory_space<vmem>>, %arg5: memref<16x27xf32, #tpu.memory_space<vmem>>) attributes {dimension_semantics = [#tpu.dimension_semantics<parallel>], iteration_bounds = array<i64: 1>, scalar_prefetch = 0 : i64, scratch_operands = 0 : i64, tpu.core_type = #tpu.core_type<tc>, window_params = [{pipeline_mode = #tpu.pipeline_mode<synchronous>, transform_indices = @transform_0, window_bounds = array<i64: 1, 27>}, {pipeline_mode = #tpu.pipeline_mode<synchronous>, transform_indices = @transform_1, window_bounds = array<i64: 1, 27>}, {pipeline_mode = #tpu.pipeline_mode<synchronous>, transform_indices = @transform_2, window_bounds = array<i64: 1, 27>}, {transform_indices = @transform_3, window_bounds = array<i64: 16, 3>}, {transform_indices = @transform_4, window_bounds = array<i64: 16, 27>}]} {
    %c0 = arith.constant 0 : index
    %c0_0 = arith.constant 0 : index
    %0 = vector.load %arg4[%c0, %c0_0] : memref<16x3xf32, #tpu.memory_space<vmem>>, vector<16x3xf32>
    %c0_1 = arith.constant 0 : index
    %c0_2 = arith.constant 0 : index
    %1 = vector.load %arg1[%c0_1, %c0_2] : memref<1x27xi32, #tpu.memory_space<vmem>>, vector<1x27xi32>
    %c0_3 = arith.constant 0 : index
    %c0_4 = arith.constant 0 : index
    %2 = vector.load %arg2[%c0_3, %c0_4] : memref<1x27xi32, #tpu.memory_space<vmem>>, vector<1x27xi32>
    %c0_5 = arith.constant 0 : index
    %c0_6 = arith.constant 0 : index
    %3 = vector.load %arg3[%c0_5, %c0_6] : memref<1x27xf32, #tpu.memory_space<vmem>>, vector<1x27xf32>
    %4 = vector.extract_strided_slice %0 {offsets = [0, 2], sizes = [16, 1], strides = [1, 1]} : vector<16x3xf32> to vector<16x1xf32>
    %5 = vector.shape_cast %4 : vector<16x1xf32> to vector<16x1xf32>
    %6 = vector.broadcast %5 : vector<16x1xf32> to vector<16x27xf32>
    %c1_i32 = arith.constant 1 : i32
    %7 = vector.broadcast %c1_i32 : i32 to vector<1x27xi32>
    %8 = arith.cmpi eq, %1, %7 : vector<1x27xi32>
    %9 = vector.extract_strided_slice %0 {offsets = [0, 1], sizes = [16, 1], strides = [1, 1]} : vector<16x3xf32> to vector<16x1xf32>
    %10 = vector.shape_cast %9 : vector<16x1xf32> to vector<16x1xf32>
    %11 = vector.broadcast %10 : vector<16x1xf32> to vector<16x27xf32>
    %12 = vector.shape_cast %8 : vector<1x27xi1> to vector<1x27xi1>
    %13 = vector.broadcast %12 : vector<1x27xi1> to vector<16x27xi1>
    %14 = arith.select %13, %11, %6 : vector<16x27xi1>, vector<16x27xf32>
    %c0_i32 = arith.constant 0 : i32
    %15 = vector.broadcast %c0_i32 : i32 to vector<1x27xi32>
    %16 = arith.cmpi eq, %1, %15 : vector<1x27xi32>
    %17 = vector.extract_strided_slice %0 {offsets = [0, 0], sizes = [16, 1], strides = [1, 1]} : vector<16x3xf32> to vector<16x1xf32>
    %18 = vector.shape_cast %17 : vector<16x1xf32> to vector<16x1xf32>
    %19 = vector.broadcast %18 : vector<16x1xf32> to vector<16x27xf32>
    %20 = vector.shape_cast %16 : vector<1x27xi1> to vector<1x27xi1>
    %21 = vector.broadcast %20 : vector<1x27xi1> to vector<16x27xi1>
    %22 = arith.select %21, %19, %14 : vector<16x27xi1>, vector<16x27xf32>
    %23 = vector.broadcast %3 : vector<1x27xf32> to vector<16x27xf32>
    %24 = arith.mulf %23, %22 : vector<16x27xf32>
    %cst = arith.constant 1.000000e+00 : f32
    %25 = vector.broadcast %cst : f32 to vector<16x27xf32>
    %26 = arith.mulf %24, %25 : vector<16x27xf32>
    %27 = math.sin %26 : vector<16x27xf32>
    %28 = math.cos %26 : vector<16x27xf32>
    %c1_i32_7 = arith.constant 1 : i32
    %29 = vector.broadcast %c1_i32_7 : i32 to vector<1x27xi32>
    %30 = arith.cmpi eq, %2, %29 : vector<1x27xi32>
    %31 = vector.shape_cast %30 : vector<1x27xi1> to vector<1x27xi1>
    %32 = vector.broadcast %31 : vector<1x27xi1> to vector<16x27xi1>
    %33 = arith.select %32, %27, %28 : vector<16x27xi1>, vector<16x27xf32>
    %c0_i32_8 = arith.constant 0 : i32
    %34 = vector.broadcast %c0_i32_8 : i32 to vector<1x27xi32>
    %35 = arith.cmpi eq, %2, %34 : vector<1x27xi32>
    %36 = vector.shape_cast %35 : vector<1x27xi1> to vector<1x27xi1>
    %37 = vector.broadcast %36 : vector<1x27xi1> to vector<16x27xi1>
    %38 = arith.select %37, %22, %33 : vector<16x27xi1>, vector<16x27xf32>
    %c0_9 = arith.constant 0 : index
    %c0_10 = arith.constant 0 : index
    %39 = vector.load %arg5[%c0_9, %c0_10] : memref<16x27xf32, #tpu.memory_space<vmem>>, vector<16x27xf32>
    tpu.vector_store %arg5[%c0_9, %c0_10], %38 {strides = array<i32>} : memref<16x27xf32, #tpu.memory_space<vmem>>, vector<16x27xf32>,
    return
  }
  func.func @transform_0(%arg0: i32) -> (i32, i32) {
    %c0_i32 = arith.constant 0 : i32
    %c0_i32_0 = arith.constant 0 : i32
    %c0_i32_1 = arith.constant 0 : i32
    return %c0_i32, %c0_i32_0 : i32, i32
  }
  func.func @transform_1(%arg0: i32) -> (i32, i32) {
    %c0_i32 = arith.constant 0 : i32
    %c0_i32_0 = arith.constant 0 : i32
    %c0_i32_1 = arith.constant 0 : i32
    return %c0_i32, %c0_i32_0 : i32, i32
  }
  func.func @transform_2(%arg0: i32) -> (i32, i32) {
    %c0_i32 = arith.constant 0 : i32
    %c0_i32_0 = arith.constant 0 : i32
    %c0_i32_1 = arith.constant 0 : i32
    return %c0_i32, %c0_i32_0 : i32, i32
  }
  func.func @transform_3(%arg0: i32) -> (i32, i32) {
    %c0_i32 = arith.constant 0 : i32
    %c0_i32_0 = arith.constant 0 : i32
    return %arg0, %c0_i32 : i32, i32
  }
  func.func @transform_4(%arg0: i32) -> (i32, i32) {
    %c0_i32 = arith.constant 0 : i32
    %c0_i32_0 = arith.constant 0 : i32
    return %arg0, %c0_i32 : i32, i32
  }
}

</mosaic_0001>

<llo_original>
// kernel: tpu_custom_call.1
$region0: #{tpu_custom_call.1}
  #allocation0 [shape = 'u32[]', space=smem, size = 0x4, offset = 0x4, fixed_abs, tag = 'smem constant byte address 0x4 - core index']
  #allocation1 [shape = 'u32[72,128]{1,0:T(1,128)}', space=vmem, size = 0x9000, scoped, tag = 'internal scratch']
  %s0 = inlined_call_operand.vmem [shape: s32[1,27], index: 0, kind: input, shape index: {}]
  %s1 = inlined_call_operand.vmem [shape: s32[1,27], index: 1, kind: input, shape index: {}]
  %s2 = inlined_call_operand.vmem [shape: f32[1,27], index: 2, kind: input, shape index: {}]
  %s3 = inlined_call_operand.vmem [shape: f32[16,3], index: 3, kind: input, shape index: {}]
  %s4 = inlined_call_operand.hbm [shape: f32[16,27], index: 4, kind: output, shape index: {}]
  %s5 = sld [smem:[#allocation0]]
  $region26: #{tpu_custom_call.1} parent=0
    _
  %s7 = ssub.s32 1, %s5
  %s8 = scalar_select 0, %s7, %s5
  $region1: #{tpu_custom_call.1} parent=0
    #allocation2 [shape = 'u8[8192]{0}', space=vmem, size = 0x2000, scoped, tag = 'output window, operand 0, single buffered']
    #allocation3 [shape = 's32[1]{0}', space=sflag, size = 0x4, scoped, tag = 'scoped memory for tpu_custom_call.1']
    %9 = vsyncpa [#allocation3], 0
    // Predicated region
    $region2: #{tpu_custom_call.1} parent=1 // pred_check
      _
    $region3: #{tpu_custom_call.1} parent=1 // pred_check_branch
      %11 = sbr.rel (0) target = $region5
    $region4: #{tpu_custom_call.1} parent=1 // pred_region
      _
    $region5: #{tpu_custom_call.1} parent=1 // pred_fallthru
      _
    // Predicated region
    $region6: #{tpu_custom_call.1} parent=1 // pred_check
      _
    $region7: #{tpu_custom_call.1} parent=1 // pred_check_branch
      %13 = sbr.rel (0) target = $region9
    $region8: #{tpu_custom_call.1} parent=1 // pred_region
      _
    $region9: #{tpu_custom_call.1} parent=1 // pred_fallthru
      _
    // Predicated region
    $region10: #{tpu_custom_call.1} parent=1 // pred_check
      _
    $region11: #{tpu_custom_call.1} parent=1 // pred_check_branch
      %15 = sbr.rel (0) target = $region13
    $region12: #{tpu_custom_call.1} parent=1 // pred_region
      _
    $region13: #{tpu_custom_call.1} parent=1 // pred_fallthru
      _
    // Predicated region
    $region14: #{tpu_custom_call.1} parent=1 // pred_check
      _
    $region15: #{tpu_custom_call.1} parent=1 // pred_check_branch
      %17 = sbr.rel (0) target = $region17
    $region16: #{tpu_custom_call.1} parent=1 // pred_region
      _
    $region17: #{tpu_custom_call.1} parent=1 // pred_fallthru
      _
    %v18 = vld [vmem:[%s3] sm:$0xff]
    %v19 = vld [vmem:[%s3 + $0x8] sm:$0xff]
    %v20 = vld [vmem:[%s0] sm:$0x1]
    %v21 = vld [vmem:[%s1] sm:$0x1]
    %v22 = vld [vmem:[%s2] sm:$0x1]
    %24 = vset.pattern.permute.xlu0 2
    %25 = vperm.xlu0 %24, %v18
    %v26 = vpop.permute.xlu0 %25
    %29 = vset.pattern.permute.xlu0 2
    %30 = vperm.xlu0 %29, %v19
    %v31 = vpop.permute.xlu0 %30
    %vm33 = vcmp.eq.s32.totalorder %v20, 1
    %34 = vset.pattern.permute.xlu0 1
    %35 = vperm.xlu0 %34, %v18
    %v36 = vpop.permute.xlu0 %35
    %38 = vset.pattern.permute.xlu0 1
    %39 = vperm.xlu0 %38, %v19
    %v40 = vpop.permute.xlu0 %39
    %v42 = vsel %vm33, 1, 0
    %v43 = vperm.slane %v42, 0
    %vm44 = vcmp.eq.s32.totalorder %v43, 1
    %v45 = vsel %vm44, %v36, %v26
    %v46 = vsel %vm44, %v40, %v31
    %vm47 = vcmp.eq.s32.totalorder %v20, 0
    %48 = vset.pattern.permute.xlu0 0
    %49 = vperm.xlu0 %48, %v18
    %v50 = vpop.permute.xlu0 %49
    %52 = vset.pattern.permute.xlu0 0
    %53 = vperm.xlu0 %52, %v19
    %v54 = vpop.permute.xlu0 %53
    %v56 = vsel %vm47, 1, 0
    %v57 = vperm.slane %v56, 0
    %vm58 = vcmp.eq.s32.totalorder %v57, 1
    %v59 = vsel %vm58, %v50, %v45
    %v60 = vsel %vm58, %v54, %v46
    %v62 = vperm.slane %v22, 0
    %v64 = vmul.f32 %v62, %v59
    %v65 = vmul.f32 %v62, %v60
    %v66 = vand.u32 2147483647, %v64
    %vm67 = vcmp.le.f32.partialorder %v66, 0.7853982
    %vm68 = vcmp.lt.s32.totalorder %v64, 0
    %v69 = vand.u32 %v64, 2139095040
    %v70 = vshrl.u32 %v69, 23
    %v71 = vsub.s32 %v70, 127
    %v72 = vand.u32 2147483647, %v64
    %v73 = vand.u32 %v72, 8388607
    %v74 = vor.u32 %v73, 8388608
    %v75 = vsub.s32 0, %v74
    %v76 = vadd.s32 %v71, 1
    %vm77 = vcmp.gt.s32.totalorder %v76, 0
    %v78 = vsel %vm77, %v76, 0
    %v79 = vshrl.u32 %v78, 5
    %v80 = vand.u32 %v78, 31
    %v81 = vsub.s32 32, %v80
    %v82 = vshrl.u32 683565275, %v81
    %v83 = vshll.u32 683565275, %v80
    %v84 = vshrl.u32 2475754826, %v81
    %v85 = vor.u32 %v83, %v84
    %v86 = vshll.u32 2475754826, %v80
    %v87 = vshrl.u32 2131351028, %v81
    %v88 = vor.u32 %v86, %v87
    %v89 = vshll.u32 2131351028, %v80
    %v90 = vshrl.u32 2102212464, %v81
    %v91 = vor.u32 %v89, %v90
    %v92 = vshll.u32 2102212464, %v80
    %v93 = vshrl.u32 920167782, %v81
    %v94 = vor.u32 %v92, %v93
    %v95 = vshll.u32 920167782, %v80
    %v96 = vshrl.u32 1326507024, %v81
    %v97 = vor.u32 %v95, %v96
    %vm98 = vcmp.lt.s32.totalorder %v79, 1
    %vm99 = vcmp.lt.s32.totalorder %v79, 2
    %vm100 = vcmp.lt.s32.totalorder %v79, 3
    %vm101 = vcmp.lt.s32.totalorder %v79, 4
    %v102 = vsel %vm98, %v82, %v85
    %v103 = vsel %vm101, %v91, 2102212464
    %v104 = vsel %vm100, %v88, %v103
    %v105 = vsel %vm99, %v102, %v104
    %v106 = vsel %vm98, %v85, %v88
    %v107 = vsel %vm101, %v94, 920167782
    %v108 = vsel %vm100, %v91, %v107
    %v109 = vsel %vm99, %v106, %v108
    %v110 = vsel %vm98, %v88, %v91
    %v111 = vsel %vm101, %v97, 1326507024
    %v112 = vsel %vm100, %v94, %v111
    %v113 = vsel %vm99, %v110, %v112
    %v114 = vshll.u32 %v74, 8
    %v115 = vand.u32 %v114, 65535
    %v116 = vshrl.u32 %v114, 16
    %v117 = vand.u32 %v113, 65535
    %v118 = vshrl.u32 %v113, 16
    %v119 = vmul.u32 %v115, %v117
    %v120 = vmul.u32 %v115, %v118
    %v121 = vmul.u32 %v116, %v117
    %v122 = vmul.u32 %v116, %v118
    %v123 = vshll.u32 %v120, 16
    %v124 = vshrl.u32 %v120, 16
    %v125 = vshll.u32 %v121, 16
    %v126 = vshrl.u32 %v121, 16
    %vm127 = vc.u32 %v119, %v123
    %v128 = vsel %vm127, 1, 0
    %v129 = vadd.s32 %v119, %v123
    %v130 = vadd.s32 %v122, %v128
    %vm131 = vc.u32 %v129, %v125
    %v132 = vsel %vm131, 1, 0
    %v133 = vadd.s32 %v129, %v125
    %v134 = vadd.s32 %v130, %v132
    %v135 = vadd.s32 %v134, %v124
    %v136 = vadd.s32 %v135, %v126
    %v137 = vand.u32 %v114, 65535
    %v138 = vshrl.u32 %v114, 16
    %v139 = vand.u32 %v109, 65535
    %v140 = vshrl.u32 %v109, 16
    %v141 = vmul.u32 %v137, %v139
    %v142 = vmul.u32 %v137, %v140
    %v143 = vmul.u32 %v138, %v139
    %v144 = vmul.u32 %v138, %v140
    %v145 = vshll.u32 %v142, 16
    %v146 = vshrl.u32 %v142, 16
    %v147 = vshll.u32 %v143, 16
    %v148 = vshrl.u32 %v143, 16
    %vm149 = vc.u32 %v141, %v145
    %v150 = vsel %vm149, 1, 0
    %v151 = vadd.s32 %v141, %v145
    %v152 = vadd.s32 %v144, %v150
    %vm153 = vc.u32 %v151, %v147
    %v154 = vsel %vm153, 1, 0
    %v155 = vadd.s32 %v151, %v147
    %v156 = vadd.s32 %v152, %v154
    %v157 = vadd.s32 %v156, %v146
    %v158 = vadd.s32 %v157, %v148
    %v159 = vmul.u32 %v114, %v105
    %v160 = vadd.s32 %v136, %v155
    %vm161 = vc.u32 %v136, %v155
    %v162 = vadd.s32 %v158, 1
    %v163 = vsel %vm161, %v162, %v158
    %v164 = vadd.s32 %v159, %v163
    %v165 = vadd.s32 %v164, 536870912
    %v166 = vshrl.u32 %v165, 30
    %v167 = vshll.u32 %v166, 30
    %v168 = vsub.s32 %v164, %v167
    %vm169 = vcmp.lt.s32.totalorder %v168, 0
    %v170 = vsub.s32 0, %v168
    %v171 = vsel %vm169, %v170, %v168
    %v172 = vclz %v171
    %v173 = vsub.s32 %v172, 2
    %vm174 = vcmp.gt.s32.totalorder 0, %v173
    %v175 = vsel %vm174, 0, %v173
    %v176 = vsub.s32 32, %v175
    %v177 = vshll.u32 %v168, %v175
    %v178 = vshrl.u32 %v160, %v176
    %v179 = vor.u32 %v177, %v178
    %v180 = vsub.s32 4294967266, %v175
    %v181 = vadd.s32 %v180, 127
    %v182 = vshll.u32 %v181, 23
    %v183 = vor.u32 4788187, %v182
    %v184 = vand.u32 2147483647, %v183
    %v186 = vcvt.s32.f32 %v179
    %v187 = vmul.f32 %v186, %v184
    %v188 = vxor.u32 %v187, 2147483648
    %v189 = vsel %vm68, %v188, %v187
    %v190 = vsub.s32 4, %v166
    %v191 = vsel %vm68, %v190, %v166
    %v192 = vsel %vm67, %v64, %v189
    %v193 = vsel %vm67, 0, %v191
    %v194 = vmul.f32 %v192, %v192
    %v195 = vmul.f32 %v194, -0.001358992
    %v196 = vadd.f32 %v195, 0.041655596
    %v197 = vmul.f32 %v194, %v196
    %v198 = vadd.f32 %v197, -0.4999988
    %v199 = vmul.f32 %v194, %v198
    %v200 = vadd.f32 1.0, %v199
    %v201 = vmul.f32 %v192, %v192
    %v202 = vmul.f32 %v201, -0.00019511016
    %v203 = vadd.f32 %v202, 0.008332121
    %v204 = vmul.f32 %v201, %v203
    %v205 = vadd.f32 %v204, -0.16666654
    %v206 = vmul.f32 %v201, %v205
    %v207 = vadd.f32 %v206, 1.0
    %v208 = vmul.f32 %v207, %v192
    %vm209 = vweird.f32 %v64
    %v210 = vadd.s32 %v193, 3
    %v211 = vand.u32 %v210, 3
    %vm212 = vcmp.lt.s32.totalorder %v211, 2
    %vm213 = vcmp.eq.s32.totalorder %v211, 0
    %v214 = vxor.u32 %v208, 2147483648
    %v215 = vsel %vm213, %v200, %v214
    %vm216 = vcmp.eq.s32.totalorder %v211, 2
    %v217 = vxor.u32 %v200, 2147483648
    %v218 = vsel %vm216, %v217, %v208
    %v219 = vsel %vm212, %v215, %v218
    %v220 = vsel %vm209, nan, %v219
    %v221 = vand.u32 2147483647, %v65
    %vm222 = vcmp.le.f32.partialorder %v221, 0.7853982
    %vm223 = vcmp.lt.s32.totalorder %v65, 0
    %v224 = vand.u32 %v65, 2139095040
    %v225 = vshrl.u32 %v224, 23
    %v226 = vsub.s32 %v225, 127
    %v227 = vand.u32 2147483647, %v65
    %v228 = vand.u32 %v227, 8388607
    %v229 = vor.u32 %v228, 8388608
    %v230 = vsub.s32 0, %v229
    %v231 = vadd.s32 %v226, 1
    %vm232 = vcmp.gt.s32.totalorder %v231, 0
    %v233 = vsel %vm232, %v231, 0
    %v234 = vshrl.u32 %v233, 5
    %v235 = vand.u32 %v233, 31
    %v236 = vsub.s32 32, %v235
    %v237 = vshrl.u32 683565275, %v236
    %v238 = vshll.u32 683565275, %v235
    %v239 = vshrl.u32 2475754826, %v236
    %v240 = vor.u32 %v238, %v239
    %v241 = vshll.u32 2475754826, %v235
    %v242 = vshrl.u32 2131351028, %v236
    %v243 = vor.u32 %v241, %v242
    %v244 = vshll.u32 2131351028, %v235
    %v245 = vshrl.u32 2102212464, %v236
    %v246 = vor.u32 %v244, %v245
    %v247 = vshll.u32 2102212464, %v235
    %v248 = vshrl.u32 920167782, %v236
    %v249 = vor.u32 %v247, %v248
    %v250 = vshll.u32 920167782, %v235
    %v251 = vshrl.u32 1326507024, %v236
    %v252 = vor.u32 %v250, %v251
    %vm253 = vcmp.lt.s32.totalorder %v234, 1
    %vm254 = vcmp.lt.s32.totalorder %v234, 2
    %vm255 = vcmp.lt.s32.totalorder %v234, 3
    %vm256 = vcmp.lt.s32.totalorder %v234, 4
    %v257 = vsel %vm253, %v237, %v240
    %v258 = vsel %vm256, %v246, 2102212464
    %v259 = vsel %vm255, %v243, %v258
    %v260 = vsel %vm254, %v257, %v259
    %v261 = vsel %vm253, %v240, %v243
    %v262 = vsel %vm256, %v249, 920167782
    %v263 = vsel %vm255, %v246, %v262
    %v264 = vsel %vm254, %v261, %v263
    %v265 = vsel %vm253, %v243, %v246
    %v266 = vsel %vm256, %v252, 1326507024
    %v267 = vsel %vm255, %v249, %v266
    %v268 = vsel %vm254, %v265, %v267
    %v269 = vshll.u32 %v229, 8
    %v270 = vand.u32 %v269, 65535
    %v271 = vshrl.u32 %v269, 16
    %v272 = vand.u32 %v268, 65535
    %v273 = vshrl.u32 %v268, 16
    %v274 = vmul.u32 %v270, %v272
    %v275 = vmul.u32 %v270, %v273
    %v276 = vmul.u32 %v271, %v272
    %v277 = vmul.u32 %v271, %v273
    %v278 = vshll.u32 %v275, 16
    %v279 = vshrl.u32 %v275, 16
    %v280 = vshll.u32 %v276, 16
    %v281 = vshrl.u32 %v276, 16
    %vm282 = vc.u32 %v274, %v278
    %v283 = vsel %vm282, 1, 0
    %v284 = vadd.s32 %v274, %v278
    %v285 = vadd.s32 %v277, %v283
    %vm286 = vc.u32 %v284, %v280
    %v287 = vsel %vm286, 1, 0
    %v288 = vadd.s32 %v284, %v280
    %v289 = vadd.s32 %v285, %v287
    %v290 = vadd.s32 %v289, %v279
    %v291 = vadd.s32 %v290, %v281
    %v292 = vand.u32 %v269, 65535
    %v293 = vshrl.u32 %v269, 16
    %v294 = vand.u32 %v264, 65535
    %v295 = vshrl.u32 %v264, 16
    %v296 = vmul.u32 %v292, %v294
    %v297 = vmul.u32 %v292, %v295
    %v298 = vmul.u32 %v293, %v294
    %v299 = vmul.u32 %v293, %v295
    %v300 = vshll.u32 %v297, 16
    %v301 = vshrl.u32 %v297, 16
    %v302 = vshll.u32 %v298, 16
    %v303 = vshrl.u32 %v298, 16
    %vm304 = vc.u32 %v296, %v300
    %v305 = vsel %vm304, 1, 0
    %v306 = vadd.s32 %v296, %v300
    %v307 = vadd.s32 %v299, %v305
    %vm308 = vc.u32 %v306, %v302
    %v309 = vsel %vm308, 1, 0
    %v310 = vadd.s32 %v306, %v302
    %v311 = vadd.s32 %v307, %v309
    %v312 = vadd.s32 %v311, %v301
    %v313 = vadd.s32 %v312, %v303
    %v314 = vmul.u32 %v269, %v260
    %v315 = vadd.s32 %v291, %v310
    %vm316 = vc.u32 %v291, %v310
    %v317 = vadd.s32 %v313, 1
    %v318 = vsel %vm316, %v317, %v313
    %v319 = vadd.s32 %v314, %v318
    %v320 = vadd.s32 %v319, 536870912
    %v321 = vshrl.u32 %v320, 30
    %v322 = vshll.u32 %v321, 30
    %v323 = vsub.s32 %v319, %v322
    %vm324 = vcmp.lt.s32.totalorder %v323, 0
    %v325 = vsub.s32 0, %v323
    %v326 = vsel %vm324, %v325, %v323
    %v327 = vclz %v326
    %v328 = vsub.s32 %v327, 2
    %vm329 = vcmp.gt.s32.totalorder 0, %v328
    %v330 = vsel %vm329, 0, %v328
    %v331 = vsub.s32 32, %v330
    %v332 = vshll.u32 %v323, %v330
    %v333 = vshrl.u32 %v315, %v331
    %v334 = vor.u32 %v332, %v333
    %v335 = vsub.s32 4294967266, %v330
    %v336 = vadd.s32 %v335, 127
    %v337 = vshll.u32 %v336, 23
    %v338 = vor.u32 4788187, %v337
    %v339 = vand.u32 2147483647, %v338
    %v341 = vcvt.s32.f32 %v334
    %v342 = vmul.f32 %v341, %v339
    %v343 = vxor.u32 %v342, 2147483648
    %v344 = vsel %vm223, %v343, %v342
    %v345 = vsub.s32 4, %v321
    %v346 = vsel %vm223, %v345, %v321
    %v347 = vsel %vm222, %v65, %v344
    %v348 = vsel %vm222, 0, %v346
    %v349 = vmul.f32 %v347, %v347
    %v350 = vmul.f32 %v349, -0.001358992
    %v351 = vadd.f32 %v350, 0.041655596
    %v352 = vmul.f32 %v349, %v351
    %v353 = vadd.f32 %v352, -0.4999988
    %v354 = vmul.f32 %v349, %v353
    %v355 = vadd.f32 1.0, %v354
    %v356 = vmul.f32 %v347, %v347
    %v357 = vmul.f32 %v356, -0.00019511016
    %v358 = vadd.f32 %v357, 0.008332121
    %v359 = vmul.f32 %v356, %v358
    %v360 = vadd.f32 %v359, -0.16666654
    %v361 = vmul.f32 %v356, %v360
    %v362 = vadd.f32 %v361, 1.0
    %v363 = vmul.f32 %v362, %v347
    %vm364 = vweird.f32 %v65
    %v365 = vadd.s32 %v348, 3
    %v366 = vand.u32 %v365, 3
    %vm367 = vcmp.lt.s32.totalorder %v366, 2
    %vm368 = vcmp.eq.s32.totalorder %v366, 0
    %v369 = vxor.u32 %v363, 2147483648
    %v370 = vsel %vm368, %v355, %v369
    %vm371 = vcmp.eq.s32.totalorder %v366, 2
    %v372 = vxor.u32 %v355, 2147483648
    %v373 = vsel %vm371, %v372, %v363
    %v374 = vsel %vm367, %v370, %v373
    %v375 = vsel %vm364, nan, %v374
    %v376 = vand.u32 2147483647, %v64
    %vm377 = vcmp.le.f32.partialorder %v376, 0.7853982
    %vm378 = vcmp.lt.s32.totalorder %v64, 0
    %v379 = vand.u32 %v64, 2139095040
    %v380 = vshrl.u32 %v379, 23
    %v381 = vsub.s32 %v380, 127
    %v382 = vand.u32 2147483647, %v64
    %v383 = vand.u32 %v382, 8388607
    %v384 = vor.u32 %v383, 8388608
    %v385 = vsub.s32 0, %v384
    %v386 = vadd.s32 %v381, 1
    %vm387 = vcmp.gt.s32.totalorder %v386, 0
    %v388 = vsel %vm387, %v386, 0
    %v389 = vshrl.u32 %v388, 5
    %v390 = vand.u32 %v388, 31
    %v391 = vsub.s32 32, %v390
    %v392 = vshrl.u32 683565275, %v391
    %v393 = vshll.u32 683565275, %v390
    %v394 = vshrl.u32 2475754826, %v391
    %v395 = vor.u32 %v393, %v394
    %v396 = vshll.u32 2475754826, %v390
    %v397 = vshrl.u32 2131351028, %v391
    %v398 = vor.u32 %v396, %v397
    %v399 = vshll.u32 2131351028, %v390
    %v400 = vshrl.u32 2102212464, %v391
    %v401 = vor.u32 %v399, %v400
    %v402 = vshll.u32 2102212464, %v390
    %v403 = vshrl.u32 920167782, %v391
    %v404 = vor.u32 %v402, %v403
    %v405 = vshll.u32 920167782, %v390
    %v406 = vshrl.u32 1326507024, %v391
    %v407 = vor.u32 %v405, %v406
    %vm408 = vcmp.lt.s32.totalorder %v389, 1
    %vm409 = vcmp.lt.s32.totalorder %v389, 2
    %vm410 = vcmp.lt.s32.totalorder %v389, 3
    %vm411 = vcmp.lt.s32.totalorder %v389, 4
    %v412 = vsel %vm408, %v392, %v395
    %v413 = vsel %vm411, %v401, 2102212464
    %v414 = vsel %vm410, %v398, %v413
    %v415 = vsel %vm409, %v412, %v414
    %v416 = vsel %vm408, %v395, %v398
    %v417 = vsel %vm411, %v404, 920167782
    %v418 = vsel %vm410, %v401, %v417
    %v419 = vsel %vm409, %v416, %v418
    %v420 = vsel %vm408, %v398, %v401
    %v421 = vsel %vm411, %v407, 1326507024
    %v422 = vsel %vm410, %v404, %v421
    %v423 = vsel %vm409, %v420, %v422
    %v424 = vshll.u32 %v384, 8
    %v425 = vand.u32 %v424, 65535
    %v426 = vshrl.u32 %v424, 16
    %v427 = vand.u32 %v423, 65535
    %v428 = vshrl.u32 %v423, 16
    %v429 = vmul.u32 %v425, %v427
    %v430 = vmul.u32 %v425, %v428
    %v431 = vmul.u32 %v426, %v427
    %v432 = vmul.u32 %v426, %v428
    %v433 = vshll.u32 %v430, 16
    %v434 = vshrl.u32 %v430, 16
    %v435 = vshll.u32 %v431, 16
    %v436 = vshrl.u32 %v431, 16
    %vm437 = vc.u32 %v429, %v433
    %v438 = vsel %vm437, 1, 0
    %v439 = vadd.s32 %v429, %v433
    %v440 = vadd.s32 %v432, %v438
    %vm441 = vc.u32 %v439, %v435
    %v442 = vsel %vm441, 1, 0
    %v443 = vadd.s32 %v439, %v435
    %v444 = vadd.s32 %v440, %v442
    %v445 = vadd.s32 %v444, %v434
    %v446 = vadd.s32 %v445, %v436
    %v447 = vand.u32 %v424, 65535
    %v448 = vshrl.u32 %v424, 16
    %v449 = vand.u32 %v419, 65535
    %v450 = vshrl.u32 %v419, 16
    %v451 = vmul.u32 %v447, %v449
    %v452 = vmul.u32 %v447, %v450
    %v453 = vmul.u32 %v448, %v449
    %v454 = vmul.u32 %v448, %v450
    %v455 = vshll.u32 %v452, 16
    %v456 = vshrl.u32 %v452, 16
    %v457 = vshll.u32 %v453, 16
    %v458 = vshrl.u32 %v453, 16
    %vm459 = vc.u32 %v451, %v455
    %v460 = vsel %vm459, 1, 0
    %v461 = vadd.s32 %v451, %v455
    %v462 = vadd.s32 %v454, %v460
    %vm463 = vc.u32 %v461, %v457
    %v464 = vsel %vm463, 1, 0
    %v465 = vadd.s32 %v461, %v457
    %v466 = vadd.s32 %v462, %v464
    %v467 = vadd.s32 %v466, %v456
    %v468 = vadd.s32 %v467, %v458
    %v469 = vmul.u32 %v424, %v415
    %v470 = vadd.s32 %v446, %v465
    %vm471 = vc.u32 %v446, %v465
    %v472 = vadd.s32 %v468, 1
    %v473 = vsel %vm471, %v472, %v468
    %v474 = vadd.s32 %v469, %v473
    %v475 = vadd.s32 %v474, 536870912
    %v476 = vshrl.u32 %v475, 30
    %v477 = vshll.u32 %v476, 30
    %v478 = vsub.s32 %v474, %v477
    %vm479 = vcmp.lt.s32.totalorder %v478, 0
    %v480 = vsub.s32 0, %v478
    %v481 = vsel %vm479, %v480, %v478
    %v482 = vclz %v481
    %v483 = vsub.s32 %v482, 2
    %vm484 = vcmp.gt.s32.totalorder 0, %v483
    %v485 = vsel %vm484, 0, %v483
    %v486 = vsub.s32 32, %v485
    %v487 = vshll.u32 %v478, %v485
    %v488 = vshrl.u32 %v470, %v486
    %v489 = vor.u32 %v487, %v488
    %v490 = vsub.s32 4294967266, %v485
    %v491 = vadd.s32 %v490, 127
    %v492 = vshll.u32 %v491, 23
    %v493 = vor.u32 4788187, %v492
    %v494 = vand.u32 2147483647, %v493
    %v496 = vcvt.s32.f32 %v489
    %v497 = vmul.f32 %v496, %v494
    %v498 = vxor.u32 %v497, 2147483648
    %v499 = vsel %vm378, %v498, %v497
    %v500 = vsub.s32 4, %v476
    %v501 = vsel %vm378, %v500, %v476
    %v502 = vsel %vm377, %v64, %v499
    %v503 = vsel %vm377, 0, %v501
    %v504 = vmul.f32 %v502, %v502
    %v505 = vmul.f32 %v504, -0.001358992
    %v506 = vadd.f32 %v505, 0.041655596
    %v507 = vmul.f32 %v504, %v506
    %v508 = vadd.f32 %v507, -0.4999988
    %v509 = vmul.f32 %v504, %v508
    %v510 = vadd.f32 1.0, %v509
    %v511 = vmul.f32 %v502, %v502
    %v512 = vmul.f32 %v511, -0.00019511016
    %v513 = vadd.f32 %v512, 0.008332121
    %v514 = vmul.f32 %v511, %v513
    %v515 = vadd.f32 %v514, -0.16666654
    %v516 = vmul.f32 %v511, %v515
    %v517 = vadd.f32 %v516, 1.0
    %v518 = vmul.f32 %v517, %v502
    %vm519 = vweird.f32 %v64
    %v520 = vand.u32 %v503, 3
    %vm521 = vcmp.lt.s32.totalorder %v520, 2
    %vm522 = vcmp.eq.s32.totalorder %v520, 0
    %v523 = vxor.u32 %v518, 2147483648
    %v524 = vsel %vm522, %v510, %v523
    %vm525 = vcmp.eq.s32.totalorder %v520, 2
    %v526 = vxor.u32 %v510, 2147483648
    %v527 = vsel %vm525, %v526, %v518
    %v528 = vsel %vm521, %v524, %v527
    %v529 = vsel %vm519, nan, %v528
    %v530 = vand.u32 2147483647, %v65
    %vm531 = vcmp.le.f32.partialorder %v530, 0.7853982
    %vm532 = vcmp.lt.s32.totalorder %v65, 0
    %v533 = vand.u32 %v65, 2139095040
    %v534 = vshrl.u32 %v533, 23
    %v535 = vsub.s32 %v534, 127
    %v536 = vand.u32 2147483647, %v65
    %v537 = vand.u32 %v536, 8388607
    %v538 = vor.u32 %v537, 8388608
    %v539 = vsub.s32 0, %v538
    %v540 = vadd.s32 %v535, 1
    %vm541 = vcmp.gt.s32.totalorder %v540, 0
    %v542 = vsel %vm541, %v540, 0
    %v543 = vshrl.u32 %v542, 5
    %v544 = vand.u32 %v542, 31
    %v545 = vsub.s32 32, %v544
    %v546 = vshrl.u32 683565275, %v545
    %v547 = vshll.u32 683565275, %v544
    %v548 = vshrl.u32 2475754826, %v545
    %v549 = vor.u32 %v547, %v548
    %v550 = vshll.u32 2475754826, %v544
    %v551 = vshrl.u32 2131351028, %v545
    %v552 = vor.u32 %v550, %v551
    %v553 = vshll.u32 2131351028, %v544
    %v554 = vshrl.u32 2102212464, %v545
    %v555 = vor.u32 %v553, %v554
    %v556 = vshll.u32 2102212464, %v544
    %v557 = vshrl.u32 920167782, %v545
    %v558 = vor.u32 %v556, %v557
    %v559 = vshll.u32 920167782, %v544
    %v560 = vshrl.u32 1326507024, %v545
    %v561 = vor.u32 %v559, %v560
    %vm562 = vcmp.lt.s32.totalorder %v543, 1
    %vm563 = vcmp.lt.s32.totalorder %v543, 2
    %vm564 = vcmp.lt.s32.totalorder %v543, 3
    %vm565 = vcmp.lt.s32.totalorder %v543, 4
    %v566 = vsel %vm562, %v546, %v549
    %v567 = vsel %vm565, %v555, 2102212464
    %v568 = vsel %vm564, %v552, %v567
    %v569 = vsel %vm563, %v566, %v568
    %v570 = vsel %vm562, %v549, %v552
    %v571 = vsel %vm565, %v558, 920167782
    %v572 = vsel %vm564, %v555, %v571
    %v573 = vsel %vm563, %v570, %v572
    %v574 = vsel %vm562, %v552, %v555
    %v575 = vsel %vm565, %v561, 1326507024
    %v576 = vsel %vm564, %v558, %v575
    %v577 = vsel %vm563, %v574, %v576
    %v578 = vshll.u32 %v538, 8
    %v579 = vand.u32 %v578, 65535
    %v580 = vshrl.u32 %v578, 16
    %v581 = vand.u32 %v577, 65535
    %v582 = vshrl.u32 %v577, 16
    %v583 = vmul.u32 %v579, %v581
    %v584 = vmul.u32 %v579, %v582
    %v585 = vmul.u32 %v580, %v581
    %v586 = vmul.u32 %v580, %v582
    %v587 = vshll.u32 %v584, 16
    %v588 = vshrl.u32 %v584, 16
    %v589 = vshll.u32 %v585, 16
    %v590 = vshrl.u32 %v585, 16
    %vm591 = vc.u32 %v583, %v587
    %v592 = vsel %vm591, 1, 0
    %v593 = vadd.s32 %v583, %v587
    %v594 = vadd.s32 %v586, %v592
    %vm595 = vc.u32 %v593, %v589
    %v596 = vsel %vm595, 1, 0
    %v597 = vadd.s32 %v593, %v589
    %v598 = vadd.s32 %v594, %v596
    %v599 = vadd.s32 %v598, %v588
    %v600 = vadd.s32 %v599, %v590
    %v601 = vand.u32 %v578, 65535
    %v602 = vshrl.u32 %v578, 16
    %v603 = vand.u32 %v573, 65535
    %v604 = vshrl.u32 %v573, 16
    %v605 = vmul.u32 %v601, %v603
    %v606 = vmul.u32 %v601, %v604
    %v607 = vmul.u32 %v602, %v603
    %v608 = vmul.u32 %v602, %v604
    %v609 = vshll.u32 %v606, 16
    %v610 = vshrl.u32 %v606, 16
    %v611 = vshll.u32 %v607, 16
    %v612 = vshrl.u32 %v607, 16
    %vm613 = vc.u32 %v605, %v609
    %v614 = vsel %vm613, 1, 0
    %v615 = vadd.s32 %v605, %v609
    %v616 = vadd.s32 %v608, %v614
    %vm617 = vc.u32 %v615, %v611
    %v618 = vsel %vm617, 1, 0
    %v619 = vadd.s32 %v615, %v611
    %v620 = vadd.s32 %v616, %v618
    %v621 = vadd.s32 %v620, %v610
    %v622 = vadd.s32 %v621, %v612
    %v623 = vmul.u32 %v578, %v569
    %v624 = vadd.s32 %v600, %v619
    %vm625 = vc.u32 %v600, %v619
    %v626 = vadd.s32 %v622, 1
    %v627 = vsel %vm625, %v626, %v622
    %v628 = vadd.s32 %v623, %v627
    %v629 = vadd.s32 %v628, 536870912
    %v630 = vshrl.u32 %v629, 30
    %v631 = vshll.u32 %v630, 30
    %v632 = vsub.s32 %v628, %v631
    %vm633 = vcmp.lt.s32.totalorder %v632, 0
    %v634 = vsub.s32 0, %v632
    %v635 = vsel %vm633, %v634, %v632
    %v636 = vclz %v635
    %v637 = vsub.s32 %v636, 2
    %vm638 = vcmp.gt.s32.totalorder 0, %v637
    %v639 = vsel %vm638, 0, %v637
    %v640 = vsub.s32 32, %v639
    %v641 = vshll.u32 %v632, %v639
    %v642 = vshrl.u32 %v624, %v640
    %v643 = vor.u32 %v641, %v642
    %v644 = vsub.s32 4294967266, %v639
    %v645 = vadd.s32 %v644, 127
    %v646 = vshll.u32 %v645, 23
    %v647 = vor.u32 4788187, %v646
    %v648 = vand.u32 2147483647, %v647
    %v650 = vcvt.s32.f32 %v643
    %v651 = vmul.f32 %v650, %v648
    %v652 = vxor.u32 %v651, 2147483648
    %v653 = vsel %vm532, %v652, %v651
    %v654 = vsub.s32 4, %v630
    %v655 = vsel %vm532, %v654, %v630
    %v656 = vsel %vm531, %v65, %v653
    %v657 = vsel %vm531, 0, %v655
    %v658 = vmul.f32 %v656, %v656
    %v659 = vmul.f32 %v658, -0.001358992
    %v660 = vadd.f32 %v659, 0.041655596
    %v661 = vmul.f32 %v658, %v660
    %v662 = vadd.f32 %v661, -0.4999988
    %v663 = vmul.f32 %v658, %v662
    %v664 = vadd.f32 1.0, %v663
    %v665 = vmul.f32 %v656, %v656
    %v666 = vmul.f32 %v665, -0.00019511016
    %v667 = vadd.f32 %v666, 0.008332121
    %v668 = vmul.f32 %v665, %v667
    %v669 = vadd.f32 %v668, -0.16666654
    %v670 = vmul.f32 %v665, %v669
    %v671 = vadd.f32 %v670, 1.0
    %v672 = vmul.f32 %v671, %v656
    %vm673 = vweird.f32 %v65
    %v674 = vand.u32 %v657, 3
    %vm675 = vcmp.lt.s32.totalorder %v674, 2
    %vm676 = vcmp.eq.s32.totalorder %v674, 0
    %v677 = vxor.u32 %v672, 2147483648
    %v678 = vsel %vm676, %v664, %v677
    %vm679 = vcmp.eq.s32.totalorder %v674, 2
    %v680 = vxor.u32 %v664, 2147483648
    %v681 = vsel %vm679, %v680, %v672
    %v682 = vsel %vm675, %v678, %v681
    %v683 = vsel %vm673, nan, %v682
    %vm684 = vcmp.eq.s32.totalorder %v21, 1
    %v685 = vsel %vm684, 1, 0
    %v686 = vperm.slane %v685, 0
    %vm687 = vcmp.eq.s32.totalorder %v686, 1
    %v688 = vsel %vm687, %v220, %v529
    %v689 = vsel %vm687, %v375, %v683
    %vm690 = vcmp.eq.s32.totalorder %v21, 0
    %v691 = vsel %vm690, 1, 0
    %v692 = vperm.slane %v691, 0
    %vm693 = vcmp.eq.s32.totalorder %v692, 1
    %v694 = vsel %vm693, %v59, %v688
    %v695 = vsel %vm693, %v60, %v689
    %vm696 = vcmask 220160
    %697 = vst.msk [vmem:[#allocation2] sm:$0xff] %vm696, %v694
    %698 = vst.msk [vmem:[#allocation2 + $0x8] sm:$0xff] %vm696, %v695
    // Predicated region
    $region18: #{tpu_custom_call.1} parent=1 // pred_check
      _
    $region19: #{tpu_custom_call.1} parent=1 // pred_check_branch
      %700 = sbr.rel (0) target = $region21
    $region20: #{tpu_custom_call.1} parent=1 // pred_region
      %702 = vsyncadd [#allocation3], 0
      %s703 = sshll.u32 [#allocation2], 4
      %s704 = int_to_ptr.vmem [resolvable:$true] %s703
      %s705 = sshll.u32 %s4, 4
      %s706 = int_to_ptr.hbm [resolvable:$true] %s705
      %711 = dma.vmem_to_hbm [thread:$0]  %s704, 256, %s706, [#allocation3], 128, 128, 8
    $region21: #{tpu_custom_call.1} parent=1 // pred_fallthru
      _
    // Predicated region
    $region22: #{tpu_custom_call.1} parent=1 // pred_check
      _
    $region23: #{tpu_custom_call.1} parent=1 // pred_check_branch
      %713 = sbr.rel (0) target = $region25
    $region24: #{tpu_custom_call.1} parent=1 // pred_region
      %715 = dma.done [#allocation3], 256
    $region25: #{tpu_custom_call.1} parent=1 // pred_fallthru
      _
    %716 = vsyncpa [#allocation3], 1

</llo_original>
